<compile_context>
chip_gen: v7x
topology: tpu7x:2x2x1
jax: 0.10.0
libtpu: 0.0.40
codegen_flags: <defaults>
</compile_context>

<pallas_src>
import functools

import jax
import jax.numpy as jnp
from jax import lax
from jax.experimental import pallas as pl
from jax.experimental.pallas import tpu as pltpu


# ----------------------------------------------------------------------------
# Fused HMC-chain kernel.
#
# Grid axis 0 = kept-sample index (sequential Markov chain, state in scratch).
# Inputs:
#   a_ref    : (D, D)             A = W W^T + I (bf16 MXU operand), resident
#   z0_ref   : (C_pad, D)         initial chain states, resident
#   p_ref    : (max_T, C_pad, D)  momentum draws for this step's transitions
#   logu_ref : (max_T, C_pad, 1)  log-uniform accept thresholds for this step
# Output:
#   out_ref  : (C_pad, D)         kept draw for this step (lane-dense)
# Scratch (carried across grid steps):
#   z_s, g_s : (C_pad, D)         current state and its gradient z A
#   u_s      : (C_pad, 1)         current potential 0.5 * z.(zA)
# ----------------------------------------------------------------------------
def _hmc_block_kernel(a_ref, z0_ref, p_ref, logu_ref, out_ref,
                      z_s, g_s, u_s,
                      *, step_size, num_leapfrog, warmup_steps, thinning):
    s = pl.program_id(0)
    eps = jnp.float32(step_size)
    A = a_ref[...]                                              # (D, D) bf16

    @pl.when(s == 0)
    def _init():
        z0 = z0_ref[...]
        g0 = jnp.dot(z0.astype(A.dtype), A,
                     preferred_element_type=jnp.float32)
        z_s[...] = z0
        g_s[...] = g0
        u_s[...] = 0.5 * jnp.sum(z0 * g0, axis=-1, keepdims=True)

    # Step 0 runs the warmup plus the first kept transition; later steps run
    # `thinning` transitions between kept draws.
    n_trans = jnp.where(s == 0,
                        jnp.int32(warmup_steps + 1),
                        jnp.int32(thinning))

    def transition(it, carry):
        z, g, u = carry
        p0 = p_ref[it]                                          # (C_pad, D)
        lu = logu_ref[it]                                       # (C_pad, 1)
        k0 = 0.5 * jnp.sum(p0 * p0, axis=-1, keepdims=True)

        # Leapfrog integration (static length -> fully unrolled at trace time).
        z_n, p_n, g_n = z, p0, g
        for _ in range(num_leapfrog):
            p_n = p_n - 0.5 * eps * g_n
            z_n = z_n + eps * p_n
            g_n = jnp.dot(z_n.astype(A.dtype), A,
                          preferred_element_type=jnp.float32)
            p_n = p_n - 0.5 * eps * g_n

        # No extra matmul: g_n = z_n A, so U(z_n) = 0.5 * z_n . g_n.
        u_n = 0.5 * jnp.sum(z_n * g_n, axis=-1, keepdims=True)
        k_n = 0.5 * jnp.sum(p_n * p_n, axis=-1, keepdims=True)

        log_accept = (u + k0) - (u_n + k_n)                     # (C_pad, 1)
        # NaN in log_accept -> comparison False -> keep old state (safe).
        accept = lu < log_accept

        z = jnp.where(accept, z_n, z)
        g = jnp.where(accept, g_n, g)
        u = jnp.where(accept, u_n, u)
        return z, g, u

    z_f, g_f, u_f = lax.fori_loop(0, n_trans, transition,
                                  (z_s[...], g_s[...], u_s[...]))

    z_s[...] = z_f
    g_s[...] = g_f
    u_s[...] = u_f
    out_ref[...] = z_f                                          # kept draw s


# ----------------------------------------------------------------------------
# NutsPrior-equivalent sampler (multiprocess='None' semantics).
# ----------------------------------------------------------------------------
class NutsPriorPallas:
    def __init__(self, num_samples, thinning, warmup_steps, step_size,
                 num_leapfrog=5, matmul_dtype=jnp.bfloat16):
        self.num_samples = num_samples
        self.thinning = thinning
        self.warmup_steps = warmup_steps
        self.step_size = step_size
        self.num_leapfrog = num_leapfrog
        self.matmul_dtype = matmul_dtype
        # mirrors the PyTorch module's bookkeeping; the kernel runs exactly
        # nb_steps transitions in total.
        self.nb_steps = (num_samples - 1) * thinning + 1 + warmup_steps

    def __call__(self, z, w, key):
        num_chains, d = z.shape
        c_pad = max(8, ((num_chains + 7) // 8) * 8)      # sublane-aligned chains
        max_t = max(self.warmup_steps + 1, self.thinning)  # transitions / step 0

        # A = W W^T + I precomputed once; stored bf16 for the MXU (energies and
        # the Metropolis test remain f32 inside the kernel).
        A = (jnp.dot(w, w.T, preferred_element_type=jnp.float32)
             + jnp.eye(d, dtype=jnp.float32)).astype(self.matmul_dtype)

        # Pad chains to a multiple of 8 rows; padded rows discarded later.
        z_pad = jnp.zeros((c_pad, d), jnp.float32).at[:num_chains].set(
            z.astype(jnp.float32))

        # Randomness for the whole run, generated once and streamed one block
        # per grid step (step 0 consumes warmup+1 slices, later steps consume
        # `thinning`; trailing slices of each block are padding).
        k_mom, k_acc = jax.random.split(key)
        p_all = jax.random.normal(
            k_mom, (self.num_samples, max_t, c_pad, d), dtype=jnp.float32)
        u_all = jax.random.uniform(
            k_acc, (self.num_samples, max_t, c_pad, 1), dtype=jnp.float32)
        logu_all = jnp.log(jnp.maximum(u_all, jnp.finfo(jnp.float32).tiny))

        kernel = functools.partial(
            _hmc_block_kernel,
            step_size=float(self.step_size),
            num_leapfrog=int(self.num_leapfrog),
            warmup_steps=int(self.warmup_steps),
            thinning=int(self.thinning))

        draws = pl.pallas_call(
            kernel,
            grid=(self.num_samples,),
            in_specs=[
                pl.BlockSpec((d, d), lambda s: (0, 0)),               # A (resident)
                pl.BlockSpec((c_pad, d), lambda s: (0, 0)),           # z0 (resident)
                pl.BlockSpec((None, max_t, c_pad, d),
                             lambda s: (s, 0, 0, 0)),                 # momenta
                pl.BlockSpec((None, max_t, c_pad, 1),
                             lambda s: (s, 0, 0, 0)),                 # log-uniforms
            ],
            out_specs=pl.BlockSpec((None, c_pad, d), lambda s: (s, 0, 0)),
            out_shape=jax.ShapeDtypeStruct(
                (self.num_samples, c_pad, d), jnp.float32),
            scratch_shapes=[
                pltpu.VMEM((c_pad, d), jnp.float32),   # z state (carried)
                pltpu.VMEM((c_pad, d), jnp.float32),   # grad state (carried)
                pltpu.VMEM((c_pad, 1), jnp.float32),   # potential (carried)
            ],
            compiler_params=pltpu.CompilerParams(
                dimension_semantics=("arbitrary",)),   # sequential Markov chain
        )(A, z_pad, p_all, logu_all)

        # Drop padded chains; chain-major concatenation (matches the PyTorch
        # multiprocess='None' branch).  Kept draws were the only HBM writes.
        kept = draws[:, :num_chains]                              # (S, C, D)
        samples = jnp.transpose(kept, (1, 0, 2)).reshape(
            num_chains * self.num_samples, d)
        return samples


# ----------------------------------------------------------------------------
# Driver
# ----------------------------------------------------------------------------
if __name__ == "__main__":
    num_chains = 4
    D = 128           # flattened input_size
    H = 128           # hidden width of the synthetic energy function

    key = jax.random.PRNGKey(0)
    k_z, k_w, k_mcmc = jax.random.split(key, 3)

    z0 = jax.random.normal(k_z, (num_chains, D), dtype=jnp.float32)
    W = 0.1 * jax.random.normal(k_w, (D, H), dtype=jnp.float32)   # deterministic init

    sampler = NutsPriorPallas(num_samples=3, thinning=2, warmup_steps=4,
                              step_size=0.05, num_leapfrog=5)

    samples = jax.jit(lambda z, w, k: sampler(z, w, k))(z0, W, k_mcmc)
    samples = jax.block_until_ready(samples)

    assert samples.shape == (num_chains * sampler.num_samples, D), samples.shape
    assert bool(jnp.all(jnp.isfinite(samples)))
    print("KERNEL_OK")
</pallas_src>

<mosaic_0001>
module attributes {stable_mosaic.version = 11 : i64} {
  func.func @_hmc_block_kernel(%arg0: i32, %arg1: memref<128x128xbf16, #tpu.memory_space<vmem>>, %arg2: memref<8x128xf32, #tpu.memory_space<vmem>>, %arg3: memref<1x5x8x128xf32, #tpu.memory_space<vmem>>, %arg4: memref<1x5x8x1xf32, #tpu.memory_space<vmem>>, %arg5: memref<1x8x128xf32, #tpu.memory_space<vmem>>, %arg6: memref<8x128xf32, #tpu.memory_space<vmem>>, %arg7: memref<8x128xf32, #tpu.memory_space<vmem>>, %arg8: memref<8x1xf32, #tpu.memory_space<vmem>>) attributes {dimension_semantics = [#tpu.dimension_semantics<arbitrary>], iteration_bounds = array<i64: 3>, scalar_prefetch = 0 : i64, scratch_operands = 3 : i64, tpu.core_type = #tpu.core_type<tc>, window_params = [{pipeline_mode = #tpu.pipeline_mode<synchronous>, transform_indices = @transform_0, window_bounds = array<i64: 128, 128>}, {pipeline_mode = #tpu.pipeline_mode<synchronous>, transform_indices = @transform_1, window_bounds = array<i64: 8, 128>}, {transform_indices = @transform_2, window_bounds = array<i64: 1, 5, 8, 128>}, {transform_indices = @transform_3, window_bounds = array<i64: 1, 5, 8, 1>}, {transform_indices = @transform_4, window_bounds = array<i64: 1, 8, 128>}]} {
    %c0 = arith.constant 0 : index
    %c0_0 = arith.constant 0 : index
    %0 = vector.load %arg1[%c0, %c0_0] : memref<128x128xbf16, #tpu.memory_space<vmem>>, vector<128x128xbf16>
    %c0_i32 = arith.constant 0 : i32
    %1 = arith.cmpi eq, %arg0, %c0_i32 : i32
    %2 = arith.extui %1 : i1 to i32
    %c0_i32_1 = arith.constant 0 : i32
    %3 = arith.cmpi ne, %2, %c0_i32_1 : i32
    scf.if %3 {
      %c0_19 = arith.constant 0 : index
      %c0_20 = arith.constant 0 : index
      %18 = vector.load %arg2[%c0_19, %c0_20] : memref<8x128xf32, #tpu.memory_space<vmem>>, vector<8x128xf32>
      %19 = arith.truncf %18 : vector<8x128xf32> to vector<8x128xbf16>
      %cst_21 = arith.constant dense<0.000000e+00> : vector<8x128xf32>
      %20 = tpu.matmul %19, %0, %cst_21 {dimension_numbers = #tpu.dot_dimension_numbers<[1], [0], [0], [1], [0, 0, 1, 1], [], []>} : vector<8x128xbf16>, vector<128x128xbf16>, vector<8x128xf32> -> vector<8x128xf32>
      %c0_22 = arith.constant 0 : index
      %c0_23 = arith.constant 0 : index
      %21 = vector.load %arg6[%c0_22, %c0_23] : memref<8x128xf32, #tpu.memory_space<vmem>>, vector<8x128xf32>
      tpu.vector_store %arg6[%c0_22, %c0_23], %18 {strides = array<i32>} : memref<8x128xf32, #tpu.memory_space<vmem>>, vector<8x128xf32>,
      %c0_24 = arith.constant 0 : index
      %c0_25 = arith.constant 0 : index
      %22 = vector.load %arg7[%c0_24, %c0_25] : memref<8x128xf32, #tpu.memory_space<vmem>>, vector<8x128xf32>
      tpu.vector_store %arg7[%c0_24, %c0_25], %20 {strides = array<i32>} : memref<8x128xf32, #tpu.memory_space<vmem>>, vector<8x128xf32>,
      %23 = arith.mulf %18, %20 : vector<8x128xf32>
      %cst_26 = arith.constant dense<0.000000e+00> : vector<8xf32>
      %24 = vector.multi_reduction <add>, %23, %cst_26 [1] : vector<8x128xf32> to vector<8xf32>
      %25 = vector.shape_cast %24 : vector<8xf32> to vector<8x1xf32>
      %cst_27 = arith.constant 5.000000e-01 : f32
      %26 = vector.broadcast %cst_27 : f32 to vector<8x1xf32>
      %27 = arith.mulf %26, %25 : vector<8x1xf32>
      %c0_28 = arith.constant 0 : index
      %c0_29 = arith.constant 0 : index
      %28 = vector.load %arg8[%c0_28, %c0_29] : memref<8x1xf32, #tpu.memory_space<vmem>>, vector<8x1xf32>
      tpu.vector_store %arg8[%c0_28, %c0_29], %27 {strides = array<i32>} : memref<8x1xf32, #tpu.memory_space<vmem>>, vector<8x1xf32>,
    } else {
    }
    %c0_i32_2 = arith.constant 0 : i32
    %4 = arith.cmpi eq, %arg0, %c0_i32_2 : i32
    %c5_i32 = arith.constant 5 : i32
    %c2_i32 = arith.constant 2 : i32
    %5 = arith.select %4, %c5_i32, %c2_i32 : i32
    %c0_3 = arith.constant 0 : index
    %c0_4 = arith.constant 0 : index
    %6 = vector.load %arg6[%c0_3, %c0_4] : memref<8x128xf32, #tpu.memory_space<vmem>>, vector<8x128xf32>
    %c0_5 = arith.constant 0 : index
    %c0_6 = arith.constant 0 : index
    %7 = vector.load %arg7[%c0_5, %c0_6] : memref<8x128xf32, #tpu.memory_space<vmem>>, vector<8x128xf32>
    %c0_7 = arith.constant 0 : index
    %c0_8 = arith.constant 0 : index
    %8 = vector.load %arg8[%c0_7, %c0_8] : memref<8x1xf32, #tpu.memory_space<vmem>>, vector<8x1xf32>
    %cst = arith.constant 5.000000e-02 : f32
    %c0_i32_9 = arith.constant 0 : i32
    %9 = arith.subi %5, %c0_i32_9 : i32
    %10 = arith.addi %c0_i32_9, %9 : i32
    %c1_i32 = arith.constant 1 : i32
    %11:3 = scf.for %arg9 = %c0_i32_9 to %10 step %c1_i32 iter_args(%arg10 = %6, %arg11 = %7, %arg12 = %8) -> (vector<8x128xf32>, vector<8x128xf32>, vector<8x1xf32>)  : i32 {
      %c0_19 = arith.constant 0 : index
      %18 = arith.index_cast %arg9 : i32 to index
      %c0_20 = arith.constant 0 : index
      %c0_21 = arith.constant 0 : index
      %19 = vector.load %arg3[%c0_19, %18, %c0_20, %c0_21] : memref<1x5x8x128xf32, #tpu.memory_space<vmem>>, vector<1x1x8x128xf32>
      %20 = vector.shape_cast %19 : vector<1x1x8x128xf32> to vector<8x128xf32>
      %c0_22 = arith.constant 0 : index
      %21 = arith.index_cast %arg9 : i32 to index
      %c0_23 = arith.constant 0 : index
      %c0_24 = arith.constant 0 : index
      %22 = vector.load %arg4[%c0_22, %21, %c0_23, %c0_24] : memref<1x5x8x1xf32, #tpu.memory_space<vmem>>, vector<1x1x8x1xf32>
      %23 = vector.shape_cast %22 : vector<1x1x8x1xf32> to vector<8x1xf32>
      %24 = arith.mulf %20, %20 : vector<8x128xf32>
      %cst_25 = arith.constant dense<0.000000e+00> : vector<8xf32>
      %25 = vector.multi_reduction <add>, %24, %cst_25 [1] : vector<8x128xf32> to vector<8xf32>
      %26 = vector.shape_cast %25 : vector<8xf32> to vector<8x1xf32>
      %cst_26 = arith.constant 5.000000e-01 : f32
      %27 = vector.broadcast %cst_26 : f32 to vector<8x1xf32>
      %28 = arith.mulf %27, %26 : vector<8x1xf32>
      %cst_27 = arith.constant 5.000000e-01 : f32
      %29 = arith.mulf %cst_27, %cst : f32
      %30 = vector.broadcast %29 : f32 to vector<8x128xf32>
      %31 = arith.mulf %30, %arg11 : vector<8x128xf32>
      %32 = arith.subf %20, %31 : vector<8x128xf32>
      %33 = vector.broadcast %cst : f32 to vector<8x128xf32>
      %34 = arith.mulf %33, %32 : vector<8x128xf32>
      %35 = arith.addf %arg10, %34 : vector<8x128xf32>
      %36 = arith.truncf %35 : vector<8x128xf32> to vector<8x128xbf16>
      %cst_28 = arith.constant dense<0.000000e+00> : vector<8x128xf32>
      %37 = tpu.matmul %36, %0, %cst_28 {dimension_numbers = #tpu.dot_dimension_numbers<[1], [0], [0], [1], [0, 0, 1, 1], [], []>} : vector<8x128xbf16>, vector<128x128xbf16>, vector<8x128xf32> -> vector<8x128xf32>
      %cst_29 = arith.constant 5.000000e-01 : f32
      %38 = arith.mulf %cst_29, %cst : f32
      %39 = vector.broadcast %38 : f32 to vector<8x128xf32>
      %40 = arith.mulf %39, %37 : vector<8x128xf32>
      %41 = arith.subf %32, %40 : vector<8x128xf32>
      %cst_30 = arith.constant 5.000000e-01 : f32
      %42 = arith.mulf %cst_30, %cst : f32
      %43 = vector.broadcast %42 : f32 to vector<8x128xf32>
      %44 = arith.mulf %43, %37 : vector<8x128xf32>
      %45 = arith.subf %41, %44 : vector<8x128xf32>
      %46 = vector.broadcast %cst : f32 to vector<8x128xf32>
      %47 = arith.mulf %46, %45 : vector<8x128xf32>
      %48 = arith.addf %35, %47 : vector<8x128xf32>
      %49 = arith.truncf %48 : vector<8x128xf32> to vector<8x128xbf16>
      %cst_31 = arith.constant dense<0.000000e+00> : vector<8x128xf32>
      %50 = tpu.matmul %49, %0, %cst_31 {dimension_numbers = #tpu.dot_dimension_numbers<[1], [0], [0], [1], [0, 0, 1, 1], [], []>} : vector<8x128xbf16>, vector<128x128xbf16>, vector<8x128xf32> -> vector<8x128xf32>
      %cst_32 = arith.constant 5.000000e-01 : f32
      %51 = arith.mulf %cst_32, %cst : f32
      %52 = vector.broadcast %51 : f32 to vector<8x128xf32>
      %53 = arith.mulf %52, %50 : vector<8x128xf32>
      %54 = arith.subf %45, %53 : vector<8x128xf32>
      %cst_33 = arith.constant 5.000000e-01 : f32
      %55 = arith.mulf %cst_33, %cst : f32
      %56 = vector.broadcast %55 : f32 to vector<8x128xf32>
      %57 = arith.mulf %56, %50 : vector<8x128xf32>
      %58 = arith.subf %54, %57 : vector<8x128xf32>
      %59 = vector.broadcast %cst : f32 to vector<8x128xf32>
      %60 = arith.mulf %59, %58 : vector<8x128xf32>
      %61 = arith.addf %48, %60 : vector<8x128xf32>
      %62 = arith.truncf %61 : vector<8x128xf32> to vector<8x128xbf16>
      %cst_34 = arith.constant dense<0.000000e+00> : vector<8x128xf32>
      %63 = tpu.matmul %62, %0, %cst_34 {dimension_numbers = #tpu.dot_dimension_numbers<[1], [0], [0], [1], [0, 0, 1, 1], [], []>} : vector<8x128xbf16>, vector<128x128xbf16>, vector<8x128xf32> -> vector<8x128xf32>
      %cst_35 = arith.constant 5.000000e-01 : f32
      %64 = arith.mulf %cst_35, %cst : f32
      %65 = vector.broadcast %64 : f32 to vector<8x128xf32>
      %66 = arith.mulf %65, %63 : vector<8x128xf32>
      %67 = arith.subf %58, %66 : vector<8x128xf32>
      %cst_36 = arith.constant 5.000000e-01 : f32
      %68 = arith.mulf %cst_36, %cst : f32
      %69 = vector.broadcast %68 : f32 to vector<8x128xf32>
      %70 = arith.mulf %69, %63 : vector<8x128xf32>
      %71 = arith.subf %67, %70 : vector<8x128xf32>
      %72 = vector.broadcast %cst : f32 to vector<8x128xf32>
      %73 = arith.mulf %72, %71 : vector<8x128xf32>
      %74 = arith.addf %61, %73 : vector<8x128xf32>
      %75 = arith.truncf %74 : vector<8x128xf32> to vector<8x128xbf16>
      %cst_37 = arith.constant dense<0.000000e+00> : vector<8x128xf32>
      %76 = tpu.matmul %75, %0, %cst_37 {dimension_numbers = #tpu.dot_dimension_numbers<[1], [0], [0], [1], [0, 0, 1, 1], [], []>} : vector<8x128xbf16>, vector<128x128xbf16>, vector<8x128xf32> -> vector<8x128xf32>
      %cst_38 = arith.constant 5.000000e-01 : f32
      %77 = arith.mulf %cst_38, %cst : f32
      %78 = vector.broadcast %77 : f32 to vector<8x128xf32>
      %79 = arith.mulf %78, %76 : vector<8x128xf32>
      %80 = arith.subf %71, %79 : vector<8x128xf32>
      %cst_39 = arith.constant 5.000000e-01 : f32
      %81 = arith.mulf %cst_39, %cst : f32
      %82 = vector.broadcast %81 : f32 to vector<8x128xf32>
      %83 = arith.mulf %82, %76 : vector<8x128xf32>
      %84 = arith.subf %80, %83 : vector<8x128xf32>
      %85 = vector.broadcast %cst : f32 to vector<8x128xf32>
      %86 = arith.mulf %85, %84 : vector<8x128xf32>
      %87 = arith.addf %74, %86 : vector<8x128xf32>
      %88 = arith.truncf %87 : vector<8x128xf32> to vector<8x128xbf16>
      %cst_40 = arith.constant dense<0.000000e+00> : vector<8x128xf32>
      %89 = tpu.matmul %88, %0, %cst_40 {dimension_numbers = #tpu.dot_dimension_numbers<[1], [0], [0], [1], [0, 0, 1, 1], [], []>} : vector<8x128xbf16>, vector<128x128xbf16>, vector<8x128xf32> -> vector<8x128xf32>
      %cst_41 = arith.constant 5.000000e-01 : f32
      %90 = arith.mulf %cst_41, %cst : f32
      %91 = vector.broadcast %90 : f32 to vector<8x128xf32>
      %92 = arith.mulf %91, %89 : vector<8x128xf32>
      %93 = arith.subf %84, %92 : vector<8x128xf32>
      %94 = arith.mulf %87, %89 : vector<8x128xf32>
      %cst_42 = arith.constant dense<0.000000e+00> : vector<8xf32>
      %95 = vector.multi_reduction <add>, %94, %cst_42 [1] : vector<8x128xf32> to vector<8xf32>
      %96 = vector.shape_cast %95 : vector<8xf32> to vector<8x1xf32>
      %cst_43 = arith.constant 5.000000e-01 : f32
      %97 = vector.broadcast %cst_43 : f32 to vector<8x1xf32>
      %98 = arith.mulf %97, %96 : vector<8x1xf32>
      %99 = arith.mulf %93, %93 : vector<8x128xf32>
      %cst_44 = arith.constant dense<0.000000e+00> : vector<8xf32>
      %100 = vector.multi_reduction <add>, %99, %cst_44 [1] : vector<8x128xf32> to vector<8xf32>
      %101 = vector.shape_cast %100 : vector<8xf32> to vector<8x1xf32>
      %cst_45 = arith.constant 5.000000e-01 : f32
      %102 = vector.broadcast %cst_45 : f32 to vector<8x1xf32>
      %103 = arith.mulf %102, %101 : vector<8x1xf32>
      %104 = arith.addf %arg12, %28 : vector<8x1xf32>
      %105 = arith.addf %98, %103 : vector<8x1xf32>
      %106 = arith.subf %104, %105 : vector<8x1xf32>
      %107 = arith.cmpf olt, %23, %106 : vector<8x1xf32>
      %108 = vector.shape_cast %107 : vector<8x1xi1> to vector<8x1xi1>
      %109 = vector.broadcast %108 : vector<8x1xi1> to vector<8x128xi1>
      %110 = arith.select %109, %87, %arg10 : vector<8x128xi1>, vector<8x128xf32>
      %111 = vector.shape_cast %107 : vector<8x1xi1> to vector<8x1xi1>
      %112 = vector.broadcast %111 : vector<8x1xi1> to vector<8x128xi1>
      %113 = arith.select %112, %89, %arg11 : vector<8x128xi1>, vector<8x128xf32>
      %114 = arith.select %107, %98, %arg12 : vector<8x1xi1>, vector<8x1xf32>
      scf.yield %110, %113, %114 : vector<8x128xf32>, vector<8x128xf32>, vector<8x1xf32>
    }
    %c0_10 = arith.constant 0 : index
    %c0_11 = arith.constant 0 : index
    %12 = vector.load %arg6[%c0_10, %c0_11] : memref<8x128xf32, #tpu.memory_space<vmem>>, vector<8x128xf32>
    tpu.vector_store %arg6[%c0_10, %c0_11], %11#0 {strides = array<i32>} : memref<8x128xf32, #tpu.memory_space<vmem>>, vector<8x128xf32>,
    %c0_12 = arith.constant 0 : index
    %c0_13 = arith.constant 0 : index
    %13 = vector.load %arg7[%c0_12, %c0_13] : memref<8x128xf32, #tpu.memory_space<vmem>>, vector<8x128xf32>
    tpu.vector_store %arg7[%c0_12, %c0_13], %11#1 {strides = array<i32>} : memref<8x128xf32, #tpu.memory_space<vmem>>, vector<8x128xf32>,
    %c0_14 = arith.constant 0 : index
    %c0_15 = arith.constant 0 : index
    %14 = vector.load %arg8[%c0_14, %c0_15] : memref<8x1xf32, #tpu.memory_space<vmem>>, vector<8x1xf32>
    tpu.vector_store %arg8[%c0_14, %c0_15], %11#2 {strides = array<i32>} : memref<8x1xf32, #tpu.memory_space<vmem>>, vector<8x1xf32>,
    %c0_16 = arith.constant 0 : index
    %c0_17 = arith.constant 0 : index
    %c0_18 = arith.constant 0 : index
    %15 = vector.load %arg5[%c0_16, %c0_17, %c0_18] : memref<1x8x128xf32, #tpu.memory_space<vmem>>, vector<1x8x128xf32>
    %16 = vector.shape_cast %15 : vector<1x8x128xf32> to vector<8x128xf32>
    %17 = vector.shape_cast %11#0 : vector<8x128xf32> to vector<1x8x128xf32>
    tpu.vector_store %arg5[%c0_16, %c0_17, %c0_18], %17 {strides = array<i32>} : memref<1x8x128xf32, #tpu.memory_space<vmem>>, vector<1x8x128xf32>,
    return
  }
  func.func @transform_0(%arg0: i32) -> (i32, i32) {
    %c0_i32 = arith.constant 0 : i32
    %c0_i32_0 = arith.constant 0 : i32
    %c0_i32_1 = arith.constant 0 : i32
    return %c0_i32, %c0_i32_0 : i32, i32
  }
  func.func @transform_1(%arg0: i32) -> (i32, i32) {
    %c0_i32 = arith.constant 0 : i32
    %c0_i32_0 = arith.constant 0 : i32
    %c0_i32_1 = arith.constant 0 : i32
    return %c0_i32, %c0_i32_0 : i32, i32
  }
  func.func @transform_2(%arg0: i32) -> (i32, i32, i32, i32) {
    %c0_i32 = arith.constant 0 : i32
    %c0_i32_0 = arith.constant 0 : i32
    %c0_i32_1 = arith.constant 0 : i32
    %c0_i32_2 = arith.constant 0 : i32
    return %arg0, %c0_i32, %c0_i32_0, %c0_i32_1 : i32, i32, i32, i32
  }
  func.func @transform_3(%arg0: i32) -> (i32, i32, i32, i32) {
    %c0_i32 = arith.constant 0 : i32
    %c0_i32_0 = arith.constant 0 : i32
    %c0_i32_1 = arith.constant 0 : i32
    %c0_i32_2 = arith.constant 0 : i32
    return %arg0, %c0_i32, %c0_i32_0, %c0_i32_1 : i32, i32, i32, i32
  }
  func.func @transform_4(%arg0: i32) -> (i32, i32, i32) {
    %c0_i32 = arith.constant 0 : i32
    %c0_i32_0 = arith.constant 0 : i32
    %c0_i32_1 = arith.constant 0 : i32
    return %arg0, %c0_i32, %c0_i32_0 : i32, i32, i32
  }
}

</mosaic_0001>

<llo_original>
// kernel: _lambda_.1
$region0: #{_lambda_.1}
  #allocation0 [shape = 'u32[]', space=smem, size = 0x4, offset = 0x4, fixed_abs, tag = 'smem constant byte address 0x4 - core index']
  #allocation1 [shape = 'u32[144,128]{1,0:T(1,128)}', space=vmem, size = 0x12000, scoped, tag = 'internal scratch']
  #allocation2 [shape = 'f32[8,128]{1,0:T(8,128)}', space=vmem, size = 0x1000, scoped, tag = 'scratch operand']
  #allocation3 [shape = 'f32[8,128]{1,0:T(8,128)}', space=vmem, size = 0x1000, scoped, tag = 'scratch operand']
  #allocation4 [shape = 'f32[8,1]{1,0:T(8,128)}', space=vmem, size = 0x1000, scoped, tag = 'scratch operand']
  %s0 = inlined_call_operand.vmem [shape: bf16[128,128], index: 0, kind: input, shape index: {}]
  %s1 = inlined_call_operand.vmem [shape: f32[8,128], index: 1, kind: input, shape index: {}]
  %s2 = inlined_call_operand.vmem [shape: f32[3,5,8,128], index: 2, kind: input, shape index: {}]
  %s3 = inlined_call_operand.vmem [shape: f32[3,5,8,1], index: 3, kind: input, shape index: {}]
  %s4 = inlined_call_operand.vmem [shape: f32[3,8,128], index: 4, kind: output, shape index: {}]
  %s5 = sld [smem:[#allocation0]]
  $region60: #{_lambda_.1} parent=0
    _
  %s7 = ssub.s32 1, %s5
  %s8 = scalar_select 0, %s7, %s5
  loop: start=0, step=1, limit=5
  $region2: #{_lambda_.1} parent=0 // loop_pre_header
    _
  $region3: #{_lambda_.1} parent=0 // loop_header
    %s10 = sphi 0, %s14
    %p11 = scmp.ge.s32.totalorder %s10, 5
    %s18 = sphi 0, %s18
    %s20 = sphi 0, %s18
    %s21 = sphi 0, %s20
    %s35 = sphi 0, %s21
    %s39 = sphi 0, %s39
    %s41 = sphi 0, %s39
    %s42 = sphi 0, %s41
    %s56 = sphi 0, %s42
    %s62 = sphi 0, %s64
    %s65 = sphi 0, %s62
    %s66 = sphi 0, %s65
    %s82 = sphi 0, %s66
    %s88 = sphi 0, %s90
    %s91 = sphi 0, %s88
    %s92 = sphi 0, %s91
    %s108 = sphi 0, %s92
    %s114 = sphi 0, %s116
    %s117 = sphi 0, %s114
    %s118 = sphi 0, %s117
    %s134 = sphi 0, %s118
  $region4: #{_lambda_.1} parent=0 // loop_header_branch
    %13 = sbr.rel (%p11) target = $region8
  $region5: #{_lambda_.1} parent=0 // loop_body
    %s15 = ssub.s32 %s10, 1
    %s16 = ssub.s32 %s10, 2
    %s17 = sadd.s32 %s10, 1
    %s19 = sadd.s32 %s18, 1
    %p22 = scmp.eq.s32.totalorder %s10, 2
    %p23 = scmp.ne.s32.totalorder %s18, %s20
    %p24 = scmp.eq.s32.totalorder %s10, 0
    %p25 = por %p23, %p24
    %p26 = scmp.ne.s32.totalorder %s18, %s20
    %p27 = scmp.eq.s32.totalorder %s15, 2
    %p28 = por %p26, %p27
    %p29 = scmp.ne.s32.totalorder %s20, %s21
    %p30 = scmp.eq.s32.totalorder %s15, 0
    %p31 = por %p29, %p30
    %p32 = scmp.ne.s32.totalorder %s20, %s21
    %p33 = scmp.eq.s32.totalorder %s16, 2
    %p34 = por %p32, %p33
    %p36 = scmp.ne.s32.totalorder %s21, %s35
    %p37 = scmp.eq.s32.totalorder %s16, 0
    %p38 = por %p36, %p37
    %s40 = sadd.s32 %s39, 1
    %p43 = scmp.eq.s32.totalorder %s10, 2
    %p44 = scmp.ne.s32.totalorder %s39, %s41
    %p45 = scmp.eq.s32.totalorder %s10, 0
    %p46 = por %p44, %p45
    %p47 = scmp.ne.s32.totalorder %s39, %s41
    %p48 = scmp.eq.s32.totalorder %s15, 2
    %p49 = por %p47, %p48
    %p50 = scmp.ne.s32.totalorder %s41, %s42
    %p51 = scmp.eq.s32.totalorder %s15, 0
    %p52 = por %p50, %p51
    %p53 = scmp.ne.s32.totalorder %s41, %s42
    %p54 = scmp.eq.s32.totalorder %s16, 2
    %p55 = por %p53, %p54
    %p57 = scmp.ne.s32.totalorder %s42, %s56
    %p58 = scmp.eq.s32.totalorder %s16, 0
    %p59 = por %p57, %p58
    %s60 = ssub.s32 %s10, %s17
    %p61 = scmp.eq.s32.totalorder %s60, 0
    %s63 = sadd.s32 %s62, 1
    %s64 = scalar_select %p61, %s62, %s63
    %p67 = pneg %p61
    %p68 = scmp.eq.s32.totalorder %s10, 2
    %p69 = por %p67, %p68
    %p70 = scmp.ne.s32.totalorder %s62, %s65
    %p71 = scmp.eq.s32.totalorder %s10, 0
    %p72 = por %p70, %p71
    %p73 = scmp.ne.s32.totalorder %s62, %s65
    %p74 = scmp.eq.s32.totalorder %s15, 2
    %p75 = por %p73, %p74
    %p76 = scmp.ne.s32.totalorder %s65, %s66
    %p77 = scmp.eq.s32.totalorder %s15, 0
    %p78 = por %p76, %p77
    %p79 = scmp.ne.s32.totalorder %s65, %s66
    %p80 = scmp.eq.s32.totalorder %s16, 2
    %p81 = por %p79, %p80
    %p83 = scmp.ne.s32.totalorder %s66, %s82
    %p84 = scmp.eq.s32.totalorder %s16, 0
    %p85 = por %p83, %p84
    %s86 = ssub.s32 %s10, %s17
    %p87 = scmp.eq.s32.totalorder %s86, 0
    %s89 = sadd.s32 %s88, 1
    %s90 = scalar_select %p87, %s88, %s89
    %p93 = pneg %p87
    %p94 = scmp.eq.s32.totalorder %s10, 2
    %p95 = por %p93, %p94
    %p96 = scmp.ne.s32.totalorder %s88, %s91
    %p97 = scmp.eq.s32.totalorder %s10, 0
    %p98 = por %p96, %p97
    %p99 = scmp.ne.s32.totalorder %s88, %s91
    %p100 = scmp.eq.s32.totalorder %s15, 2
    %p101 = por %p99, %p100
    %p102 = scmp.ne.s32.totalorder %s91, %s92
    %p103 = scmp.eq.s32.totalorder %s15, 0
    %p104 = por %p102, %p103
    %p105 = scmp.ne.s32.totalorder %s91, %s92
    %p106 = scmp.eq.s32.totalorder %s16, 2
    %p107 = por %p105, %p106
    %p109 = scmp.ne.s32.totalorder %s92, %s108
    %p110 = scmp.eq.s32.totalorder %s16, 0
    %p111 = por %p109, %p110
    %s112 = ssub.s32 %s10, %s17
    %p113 = scmp.eq.s32.totalorder %s112, 0
    %s115 = sadd.s32 %s114, 1
    %s116 = scalar_select %p113, %s114, %s115
    %p119 = pneg %p113
    %p120 = scmp.eq.s32.totalorder %s10, 2
    %p121 = por %p119, %p120
    %p122 = scmp.ne.s32.totalorder %s114, %s117
    %p123 = scmp.eq.s32.totalorder %s10, 0
    %p124 = por %p122, %p123
    %p125 = scmp.ne.s32.totalorder %s114, %s117
    %p126 = scmp.eq.s32.totalorder %s15, 2
    %p127 = por %p125, %p126
    %p128 = scmp.ne.s32.totalorder %s117, %s118
    %p129 = scmp.eq.s32.totalorder %s15, 0
    %p130 = por %p128, %p129
    %p131 = scmp.ne.s32.totalorder %s117, %s118
    %p132 = scmp.eq.s32.totalorder %s16, 2
    %p133 = por %p131, %p132
    %p135 = scmp.ne.s32.totalorder %s118, %s134
    %p136 = scmp.eq.s32.totalorder %s16, 0
    %p137 = por %p135, %p136
    %p138 = scmp.le.s32.totalorder 1, %s10
    %p139 = scmp.lt.s32.totalorder %s10, 4
    %p140 = pnand %p138, %p139
    %p141 = pneg %p140
    // Predicated region
    $region9: #{_lambda_.1} parent=5 // pred_check
      _
    $region10: #{_lambda_.1} parent=5 // pred_check_branch
      %143 = sbr.rel (%p140) target = $region12
    $region11: #{_lambda_.1} parent=5 // pred_region
      %s144 = ssub.s32 %s10, 1
      // Predicated region
      $region13: #{_lambda_.1} parent=11 // pred_check
        %p145 = pneg %p31
      $region14: #{_lambda_.1} parent=11 // pred_check_branch
        %147 = sbr.rel (%p145) target = $region16
      $region15: #{_lambda_.1} parent=11 // pred_region
        _
      $region16: #{_lambda_.1} parent=11 // pred_fallthru
        _
      // Predicated region
      $region17: #{_lambda_.1} parent=11 // pred_check
        %p148 = pneg %p52
      $region18: #{_lambda_.1} parent=11 // pred_check_branch
        %150 = sbr.rel (%p148) target = $region20
      $region19: #{_lambda_.1} parent=11 // pred_region
        _
      $region20: #{_lambda_.1} parent=11 // pred_fallthru
        _
    $region12: #{_lambda_.1} parent=5 // pred_fallthru
      _
    %p151 = scmp.lt.s32.totalorder %s10, 3
    // Predicated region
    $region21: #{_lambda_.1} parent=5 // pred_check
      %p152 = pneg %p151
    $region22: #{_lambda_.1} parent=5 // pred_check_branch
      %154 = sbr.rel (%p152) target = $region24
    $region23: #{_lambda_.1} parent=5 // pred_region
      // Predicated region
      $region25: #{_lambda_.1} parent=23 // pred_check
        %p155 = pneg %p72
      $region26: #{_lambda_.1} parent=23 // pred_check_branch
        %157 = sbr.rel (%p155) target = $region28
      $region27: #{_lambda_.1} parent=23 // pred_region
        %p158 = scmp.lt.s32.totalorder %s10, 2
        %s159 = scalar_select %p158, %s10, 2
        %s160 = smul.addr %s159, 5
        %s161 = smul.addr %s160, 8
        %s162 = scalar_lea.vmem %s2, %s161
      $region28: #{_lambda_.1} parent=23 // pred_fallthru
        _
      // Predicated region
      $region29: #{_lambda_.1} parent=23 // pred_check
        %p163 = pneg %p98
      $region30: #{_lambda_.1} parent=23 // pred_check_branch
        %165 = sbr.rel (%p163) target = $region32
      $region31: #{_lambda_.1} parent=23 // pred_region
        %p166 = scmp.lt.s32.totalorder %s10, 2
        %s167 = scalar_select %p166, %s10, 2
        %s168 = smul.addr %s167, 5
        %s169 = smul.addr %s168, 8
        %s170 = scalar_lea.vmem %s3, %s169
      $region32: #{_lambda_.1} parent=23 // pred_fallthru
        _
    $region24: #{_lambda_.1} parent=5 // pred_fallthru
      _
    %p171 = scmp.le.s32.totalorder 1, %s10
    %p172 = scmp.lt.s32.totalorder %s10, 4
    %p173 = pnand %p171, %p172
    %p174 = pneg %p173
    // Predicated region
    $region33: #{_lambda_.1} parent=5 // pred_check
      _
    $region34: #{_lambda_.1} parent=5 // pred_check_branch
      %176 = sbr.rel (%p173) target = $region36
    $region35: #{_lambda_.1} parent=5 // pred_region
      %s177 = ssub.s32 %s10, 1
      %p178 = pneg %p31
      %p179 = pneg %p28
      %p180 = pneg %p52
      %p181 = pneg %p49
      %p182 = scmp.lt.s32.totalorder %s15, 2
      %s183 = scalar_select %p182, %s15, 2
      %s184 = smul.addr %s183, 5
      %s185 = smul.addr %s184, 8
      %s186 = scalar_lea.vmem %s2, %s185
      %p187 = pneg %p78
      %p188 = pneg %p75
      %p189 = scmp.lt.s32.totalorder %s15, 2
      %s190 = scalar_select %p189, %s15, 2
      %s191 = smul.addr %s190, 5
      %s192 = smul.addr %s191, 8
      %s193 = scalar_lea.vmem %s3, %s192
      %p194 = pneg %p104
      %p195 = pneg %p101
      %p196 = pneg %p130
      %p197 = pneg %p127
      %p198 = scmp.lt.s32.totalorder %s15, 2
      %s199 = scalar_select %p198, %s15, 2
      %s200 = smul.addr %s199, 8
      %s201 = scalar_lea.vmem %s4, %s200
      %p202 = scmp.lt.s32.totalorder %s15, 2
      %s203 = scalar_select %p202, %s15, 2
      %s204 = smul.addr %s203, 5
      %s205 = smul.addr %s204, 8
      %s206 = scalar_lea.vmem %s2, %s205
      %p207 = scmp.lt.s32.totalorder %s15, 2
      %s208 = scalar_select %p207, %s15, 2
      %s209 = smul.addr %s208, 5
      %s210 = smul.addr %s209, 8
      %s211 = scalar_lea.vmem %s3, %s210
      %p212 = scmp.lt.s32.totalorder %s15, 2
      %s213 = scalar_select %p212, %s15, 2
      %s214 = smul.addr %s213, 8
      %s215 = scalar_lea.vmem %s4, %s214
      %v217 = vld [vmem:[%s0] sm:$0xf]
      %v218 = vld [vmem:[%s0 + $0x4] sm:$0xf]
      %v219 = vld [vmem:[%s0 + $0x8] sm:$0xf]
      %v220 = vld [vmem:[%s0 + $0xc] sm:$0xf]
      %v221 = vld [vmem:[%s0 + $0x10] sm:$0xf]
      %v222 = vld [vmem:[%s0 + $0x14] sm:$0xf]
      %v223 = vld [vmem:[%s0 + $0x18] sm:$0xf]
      %v224 = vld [vmem:[%s0 + $0x1c] sm:$0xf]
      %v225 = vld [vmem:[%s0 + $0x20] sm:$0xf]
      %v226 = vld [vmem:[%s0 + $0x24] sm:$0xf]
      %v227 = vld [vmem:[%s0 + $0x28] sm:$0xf]
      %v228 = vld [vmem:[%s0 + $0x2c] sm:$0xf]
      %v229 = vld [vmem:[%s0 + $0x30] sm:$0xf]
      %v230 = vld [vmem:[%s0 + $0x34] sm:$0xf]
      %v231 = vld [vmem:[%s0 + $0x38] sm:$0xf]
      %v232 = vld [vmem:[%s0 + $0x3c] sm:$0xf]
      %p233 = scmp.eq.s32.totalorder %s15, 0
      // Predicated region
      $region37: #{_lambda_.1} parent=35 // pred_check
        %p234 = pneg %p233
      $region38: #{_lambda_.1} parent=35 // pred_check_branch
        %236 = sbr.rel (%p234) target = $region40
      $region39: #{_lambda_.1} parent=35 // pred_region
        %v237 = vld [vmem:[%s1] sm:$0xff]
        %v238 = vpack.c.bf16 %v237, %v237
        %v255 = vunpack.c.l.b16 %v217
        %v256 = vunpack.c.l.b16 %v218
        %v257 = vunpack.c.l.b16 %v219
        %v258 = vunpack.c.l.b16 %v220
        %v259 = vunpack.c.l.b16 %v221
        %v260 = vunpack.c.l.b16 %v222
        %v261 = vunpack.c.l.b16 %v223
        %v262 = vunpack.c.l.b16 %v224
        %v263 = vunpack.c.l.b16 %v225
        %v264 = vunpack.c.l.b16 %v226
        %v265 = vunpack.c.l.b16 %v227
        %v266 = vunpack.c.l.b16 %v228
        %v267 = vunpack.c.l.b16 %v229
        %v268 = vunpack.c.l.b16 %v230
        %v269 = vunpack.c.l.b16 %v231
        %v270 = vunpack.c.l.b16 %v232
        %v271 = vpack.c.b16 %v256, %v255
        %v272 = vpack.c.b16 %v258, %v257
        %v273 = vpack.c.b16 %v260, %v259
        %v274 = vpack.c.b16 %v262, %v261
        %v275 = vpack.c.b16 %v264, %v263
        %v276 = vpack.c.b16 %v266, %v265
        %v277 = vpack.c.b16 %v268, %v267
        %v278 = vpack.c.b16 %v270, %v269
        %287 = vmatprep.subr.bf16.mxu0 0
        %288 = vmatpush1.bf16.msra.mxu0 %v271
        %289 = vmatprep.subr.bf16.mxu0 0
        %290 = vmatpush1.bf16.msra.mxu0 %v272
        %291 = vmatprep.subr.bf16.mxu0 0
        %292 = vmatpush1.bf16.msra.mxu0 %v273
        %293 = vmatprep.subr.bf16.mxu0 0
        %294 = vmatpush1.bf16.msra.mxu0 %v274
        %295 = vmatprep.subr.bf16.mxu0 0
        %296 = vmatpush1.bf16.msra.mxu0 %v275
        %297 = vmatprep.subr.bf16.mxu0 0
        %298 = vmatpush1.bf16.msra.mxu0 %v276
        %299 = vmatprep.subr.bf16.mxu0 0
        %300 = vmatpush1.bf16.msra.mxu0 %v277
        %301 = vmatprep.subr.bf16.mxu0 0
        %302 = vmatpush1.bf16.msra.mxu0 %v278
        %303 = vmatprep.subr.bf16.mxu0 0
        %304 = vmatpush1.bf16.msra.mxu0 0
        %305 = vmatprep.subr.bf16.mxu0 0
        %306 = vmatpush1.bf16.msra.mxu0 0
        %307 = vmatprep.subr.bf16.mxu0 0
        %308 = vmatpush1.bf16.msra.mxu0 0
        %309 = vmatprep.subr.bf16.mxu0 0
        %310 = vmatpush1.bf16.msra.mxu0 0
        %311 = vmatprep.subr.bf16.mxu0 0
        %312 = vmatpush1.bf16.msra.mxu0 0
        %313 = vmatprep.subr.bf16.mxu0 0
        %314 = vmatpush1.bf16.msra.mxu0 0
        %315 = vmatprep.subr.bf16.mxu0 0
        %316 = vmatpush1.bf16.msra.mxu0 0
        %317 = vmatprep.subr.bf16.mxu0 0
        %318 = vmatpush1.bf16.msra.mxu0 0
        %319 = vmatprep.mubr.bf16.mxu0 0
        %320 = vmatmul.mubr.bf16.gmra.mrb[0].mxu0 %v238
        %v321 = vpop.f32.mrb[0].mxu0
        %v322 = vadd.f32 0.0, %v321
        %v323 = vpop.f32.mrb[0].mxu0
        %v324 = vpop.f32.mrb[0].mxu0
        %v325 = vpop.f32.mrb[0].mxu0
        %326 = vdwg.mxu0
        %327 = vst [vmem:[#allocation2] sm:$0xff] %v237
        %328 = vst [vmem:[#allocation3] sm:$0xff] %v322
        %v329 = vmul.f32 %v237, %v322
        %330 = vadd.xlane.f32.xlu0 %v329
        %v331 = vpop.xlane.xlu0 %330
        %v332 = vmul.f32 %v331, 0.5
        %vm333 = vcmask 7168
        %334 = vst.msk [vmem:[#allocation4] sm:$0xff] %vm333, %v332
      $region40: #{_lambda_.1} parent=35 // pred_fallthru
        _
      %s335 = scalar_select %p233, 5, 2
      %v336 = vld [vmem:[#allocation2] sm:$0xff]
      %v337 = vld [vmem:[#allocation3] sm:$0xff]
      %v338 = vld [vmem:[#allocation4] sm:$0xff]
      // While loop
      $region41: #{_lambda_.1} parent=35 // loop_pre_header
        _
      $region42: #{_lambda_.1} parent=35 // loop_header
        %s340 = sphi 0, %s342
        %p341 = scmp.ge.s32.totalorder %s340, %s335
        %v345 = vphi %v336, %v653
        %v346 = vphi %v337, %v654
        %v347 = vphi %v338, %v655
      $region43: #{_lambda_.1} parent=35 // loop_header_branch
        %344 = sbr.rel (%p341) target = $region47
      $region44: #{_lambda_.1} parent=35 // loop_body
        %s348 = smul.u32 %s340, 8
        %s349 = scalar_lea.vmem %s206, %s348
        %v350 = vld [vmem:[%s349] sm:$0xff]
        %s351 = scalar_lea.vmem %s211, %s348
        %v352 = vld [vmem:[%s351] sm:$0xff]
        %v353 = vmul.f32 %v350, %v350
        %354 = vadd.xlane.f32.xlu0 %v353
        %v355 = vpop.xlane.xlu0 %354
        %v356 = vmul.f32 %v355, 0.5
        %v357 = vmul.f32 %v346, 0.025
        %v358 = vsub.f32 %v350, %v357
        %v359 = vmul.f32 %v358, 0.05
        %v360 = vadd.f32 %v345, %v359
        %v361 = vpack.c.bf16 %v360, %v360
        %v378 = vunpack.c.l.b16 %v217
        %v379 = vunpack.c.l.b16 %v218
        %v380 = vunpack.c.l.b16 %v219
        %v381 = vunpack.c.l.b16 %v220
        %v382 = vunpack.c.l.b16 %v221
        %v383 = vunpack.c.l.b16 %v222
        %v384 = vunpack.c.l.b16 %v223
        %v385 = vunpack.c.l.b16 %v224
        %v386 = vunpack.c.l.b16 %v225
        %v387 = vunpack.c.l.b16 %v226
        %v388 = vunpack.c.l.b16 %v227
        %v389 = vunpack.c.l.b16 %v228
        %v390 = vunpack.c.l.b16 %v229
        %v391 = vunpack.c.l.b16 %v230
        %v392 = vunpack.c.l.b16 %v231
        %v393 = vunpack.c.l.b16 %v232
        %v394 = vpack.c.b16 %v379, %v378
        %v395 = vpack.c.b16 %v381, %v380
        %v396 = vpack.c.b16 %v383, %v382
        %v397 = vpack.c.b16 %v385, %v384
        %v398 = vpack.c.b16 %v387, %v386
        %v399 = vpack.c.b16 %v389, %v388
        %v400 = vpack.c.b16 %v391, %v390
        %v401 = vpack.c.b16 %v393, %v392
        %410 = vmatprep.subr.bf16.mxu0 0
        %411 = vmatpush1.bf16.msra.mxu0 %v394
        %412 = vmatprep.subr.bf16.mxu0 0
        %413 = vmatpush1.bf16.msra.mxu0 %v395
        %414 = vmatprep.subr.bf16.mxu0 0
        %415 = vmatpush1.bf16.msra.mxu0 %v396
        %416 = vmatprep.subr.bf16.mxu0 0
        %417 = vmatpush1.bf16.msra.mxu0 %v397
        %418 = vmatprep.subr.bf16.mxu0 0
        %419 = vmatpush1.bf16.msra.mxu0 %v398
        %420 = vmatprep.subr.bf16.mxu0 0
        %421 = vmatpush1.bf16.msra.mxu0 %v399
        %422 = vmatprep.subr.bf16.mxu0 0
        %423 = vmatpush1.bf16.msra.mxu0 %v400
        %424 = vmatprep.subr.bf16.mxu0 0
        %425 = vmatpush1.bf16.msra.mxu0 %v401
        %426 = vmatprep.subr.bf16.mxu0 0
        %427 = vmatpush1.bf16.msra.mxu0 0
        %428 = vmatprep.subr.bf16.mxu0 0
        %429 = vmatpush1.bf16.msra.mxu0 0
        %430 = vmatprep.subr.bf16.mxu0 0
        %431 = vmatpush1.bf16.msra.mxu0 0
        %432 = vmatprep.subr.bf16.mxu0 0
        %433 = vmatpush1.bf16.msra.mxu0 0
        %434 = vmatprep.subr.bf16.mxu0 0
        %435 = vmatpush1.bf16.msra.mxu0 0
        %436 = vmatprep.subr.bf16.mxu0 0
        %437 = vmatpush1.bf16.msra.mxu0 0
        %438 = vmatprep.subr.bf16.mxu0 0
        %439 = vmatpush1.bf16.msra.mxu0 0
        %440 = vmatprep.subr.bf16.mxu0 0
        %441 = vmatpush1.bf16.msra.mxu0 0
        %442 = vmatprep.mubr.bf16.mxu0 0
        %443 = vmatmul.mubr.bf16.gmra.mrb[0].mxu0 %v361
        %v444 = vpop.f32.mrb[0].mxu0
        %v445 = vadd.f32 0.0, %v444
        %v446 = vpop.f32.mrb[0].mxu0
        %v447 = vpop.f32.mrb[0].mxu0
        %v448 = vpop.f32.mrb[0].mxu0
        %449 = vdwg.mxu0
        %v450 = vmul.f32 %v445, 0.025
        %v451 = vsub.f32 %v358, %v450
        %v452 = vsub.f32 %v451, %v450
        %v453 = vmul.f32 %v452, 0.05
        %v454 = vadd.f32 %v360, %v453
        %v455 = vpack.c.bf16 %v454, %v454
        %456 = vmatprep.subr.bf16.mxu0 0
        %457 = vmatpush1.bf16.msra.mxu0 %v394
        %458 = vmatprep.subr.bf16.mxu0 0
        %459 = vmatpush1.bf16.msra.mxu0 %v395
        %460 = vmatprep.subr.bf16.mxu0 0
        %461 = vmatpush1.bf16.msra.mxu0 %v396
        %462 = vmatprep.subr.bf16.mxu0 0
        %463 = vmatpush1.bf16.msra.mxu0 %v397
        %464 = vmatprep.subr.bf16.mxu0 0
        %465 = vmatpush1.bf16.msra.mxu0 %v398
        %466 = vmatprep.subr.bf16.mxu0 0
        %467 = vmatpush1.bf16.msra.mxu0 %v399
        %468 = vmatprep.subr.bf16.mxu0 0
        %469 = vmatpush1.bf16.msra.mxu0 %v400
        %470 = vmatprep.subr.bf16.mxu0 0
        %471 = vmatpush1.bf16.msra.mxu0 %v401
        %472 = vmatprep.subr.bf16.mxu0 0
        %473 = vmatpush1.bf16.msra.mxu0 0
        %474 = vmatprep.subr.bf16.mxu0 0
        %475 = vmatpush1.bf16.msra.mxu0 0
        %476 = vmatprep.subr.bf16.mxu0 0
        %477 = vmatpush1.bf16.msra.mxu0 0
        %478 = vmatprep.subr.bf16.mxu0 0
        %479 = vmatpush1.bf16.msra.mxu0 0
        %480 = vmatprep.subr.bf16.mxu0 0
        %481 = vmatpush1.bf16.msra.mxu0 0
        %482 = vmatprep.subr.bf16.mxu0 0
        %483 = vmatpush1.bf16.msra.mxu0 0
        %484 = vmatprep.subr.bf16.mxu0 0
        %485 = vmatpush1.bf16.msra.mxu0 0
        %486 = vmatprep.subr.bf16.mxu0 0
        %487 = vmatpush1.bf16.msra.mxu0 0
        %488 = vmatprep.mubr.bf16.mxu0 0
        %489 = vmatmul.mubr.bf16.gmra.mrb[0].mxu0 %v455
        %v490 = vpop.f32.mrb[0].mxu0
        %v491 = vadd.f32 0.0, %v490
        %v492 = vpop.f32.mrb[0].mxu0
        %v493 = vpop.f32.mrb[0].mxu0
        %v494 = vpop.f32.mrb[0].mxu0
        %495 = vdwg.mxu0
        %v496 = vmul.f32 %v491, 0.025
        %v497 = vsub.f32 %v452, %v496
        %v498 = vsub.f32 %v497, %v496
        %v499 = vmul.f32 %v498, 0.05
        %v500 = vadd.f32 %v454, %v499
        %v501 = vpack.c.bf16 %v500, %v500
        %502 = vmatprep.subr.bf16.mxu0 0
        %503 = vmatpush1.bf16.msra.mxu0 %v394
        %504 = vmatprep.subr.bf16.mxu0 0
        %505 = vmatpush1.bf16.msra.mxu0 %v395
        %506 = vmatprep.subr.bf16.mxu0 0
        %507 = vmatpush1.bf16.msra.mxu0 %v396
        %508 = vmatprep.subr.bf16.mxu0 0
        %509 = vmatpush1.bf16.msra.mxu0 %v397
        %510 = vmatprep.subr.bf16.mxu0 0
        %511 = vmatpush1.bf16.msra.mxu0 %v398
        %512 = vmatprep.subr.bf16.mxu0 0
        %513 = vmatpush1.bf16.msra.mxu0 %v399
        %514 = vmatprep.subr.bf16.mxu0 0
        %515 = vmatpush1.bf16.msra.mxu0 %v400
        %516 = vmatprep.subr.bf16.mxu0 0
        %517 = vmatpush1.bf16.msra.mxu0 %v401
        %518 = vmatprep.subr.bf16.mxu0 0
        %519 = vmatpush1.bf16.msra.mxu0 0
        %520 = vmatprep.subr.bf16.mxu0 0
        %521 = vmatpush1.bf16.msra.mxu0 0
        %522 = vmatprep.subr.bf16.mxu0 0
        %523 = vmatpush1.bf16.msra.mxu0 0
        %524 = vmatprep.subr.bf16.mxu0 0
        %525 = vmatpush1.bf16.msra.mxu0 0
        %526 = vmatprep.subr.bf16.mxu0 0
        %527 = vmatpush1.bf16.msra.mxu0 0
        %528 = vmatprep.subr.bf16.mxu0 0
        %529 = vmatpush1.bf16.msra.mxu0 0
        %530 = vmatprep.subr.bf16.mxu0 0
        %531 = vmatpush1.bf16.msra.mxu0 0
        %532 = vmatprep.subr.bf16.mxu0 0
        %533 = vmatpush1.bf16.msra.mxu0 0
        %534 = vmatprep.mubr.bf16.mxu0 0
        %535 = vmatmul.mubr.bf16.gmra.mrb[0].mxu0 %v501
        %v536 = vpop.f32.mrb[0].mxu0
        %v537 = vadd.f32 0.0, %v536
        %v538 = vpop.f32.mrb[0].mxu0
        %v539 = vpop.f32.mrb[0].mxu0
        %v540 = vpop.f32.mrb[0].mxu0
        %541 = vdwg.mxu0
        %v542 = vmul.f32 %v537, 0.025
        %v543 = vsub.f32 %v498, %v542
        %v544 = vsub.f32 %v543, %v542
        %v545 = vmul.f32 %v544, 0.05
        %v546 = vadd.f32 %v500, %v545
        %v547 = vpack.c.bf16 %v546, %v546
        %548 = vmatprep.subr.bf16.mxu0 0
        %549 = vmatpush1.bf16.msra.mxu0 %v394
        %550 = vmatprep.subr.bf16.mxu0 0
        %551 = vmatpush1.bf16.msra.mxu0 %v395
        %552 = vmatprep.subr.bf16.mxu0 0
        %553 = vmatpush1.bf16.msra.mxu0 %v396
        %554 = vmatprep.subr.bf16.mxu0 0
        %555 = vmatpush1.bf16.msra.mxu0 %v397
        %556 = vmatprep.subr.bf16.mxu0 0
        %557 = vmatpush1.bf16.msra.mxu0 %v398
        %558 = vmatprep.subr.bf16.mxu0 0
        %559 = vmatpush1.bf16.msra.mxu0 %v399
        %560 = vmatprep.subr.bf16.mxu0 0
        %561 = vmatpush1.bf16.msra.mxu0 %v400
        %562 = vmatprep.subr.bf16.mxu0 0
        %563 = vmatpush1.bf16.msra.mxu0 %v401
        %564 = vmatprep.subr.bf16.mxu0 0
        %565 = vmatpush1.bf16.msra.mxu0 0
        %566 = vmatprep.subr.bf16.mxu0 0
        %567 = vmatpush1.bf16.msra.mxu0 0
        %568 = vmatprep.subr.bf16.mxu0 0
        %569 = vmatpush1.bf16.msra.mxu0 0
        %570 = vmatprep.subr.bf16.mxu0 0
        %571 = vmatpush1.bf16.msra.mxu0 0
        %572 = vmatprep.subr.bf16.mxu0 0
        %573 = vmatpush1.bf16.msra.mxu0 0
        %574 = vmatprep.subr.bf16.mxu0 0
        %575 = vmatpush1.bf16.msra.mxu0 0
        %576 = vmatprep.subr.bf16.mxu0 0
        %577 = vmatpush1.bf16.msra.mxu0 0
        %578 = vmatprep.subr.bf16.mxu0 0
        %579 = vmatpush1.bf16.msra.mxu0 0
        %580 = vmatprep.mubr.bf16.mxu0 0
        %581 = vmatmul.mubr.bf16.gmra.mrb[0].mxu0 %v547
        %v582 = vpop.f32.mrb[0].mxu0
        %v583 = vadd.f32 0.0, %v582
        %v584 = vpop.f32.mrb[0].mxu0
        %v585 = vpop.f32.mrb[0].mxu0
        %v586 = vpop.f32.mrb[0].mxu0
        %587 = vdwg.mxu0
        %v588 = vmul.f32 %v583, 0.025
        %v589 = vsub.f32 %v544, %v588
        %v590 = vsub.f32 %v589, %v588
        %v591 = vmul.f32 %v590, 0.05
        %v592 = vadd.f32 %v546, %v591
        %v593 = vpack.c.bf16 %v592, %v592
        %594 = vmatprep.subr.bf16.mxu0 0
        %595 = vmatpush1.bf16.msra.mxu0 %v394
        %596 = vmatprep.subr.bf16.mxu0 0
        %597 = vmatpush1.bf16.msra.mxu0 %v395
        %598 = vmatprep.subr.bf16.mxu0 0
        %599 = vmatpush1.bf16.msra.mxu0 %v396
        %600 = vmatprep.subr.bf16.mxu0 0
        %601 = vmatpush1.bf16.msra.mxu0 %v397
        %602 = vmatprep.subr.bf16.mxu0 0
        %603 = vmatpush1.bf16.msra.mxu0 %v398
        %604 = vmatprep.subr.bf16.mxu0 0
        %605 = vmatpush1.bf16.msra.mxu0 %v399
        %606 = vmatprep.subr.bf16.mxu0 0
        %607 = vmatpush1.bf16.msra.mxu0 %v400
        %608 = vmatprep.subr.bf16.mxu0 0
        %609 = vmatpush1.bf16.msra.mxu0 %v401
        %610 = vmatprep.subr.bf16.mxu0 0
        %611 = vmatpush1.bf16.msra.mxu0 0
        %612 = vmatprep.subr.bf16.mxu0 0
        %613 = vmatpush1.bf16.msra.mxu0 0
        %614 = vmatprep.subr.bf16.mxu0 0
        %615 = vmatpush1.bf16.msra.mxu0 0
        %616 = vmatprep.subr.bf16.mxu0 0
        %617 = vmatpush1.bf16.msra.mxu0 0
        %618 = vmatprep.subr.bf16.mxu0 0
        %619 = vmatpush1.bf16.msra.mxu0 0
        %620 = vmatprep.subr.bf16.mxu0 0
        %621 = vmatpush1.bf16.msra.mxu0 0
        %622 = vmatprep.subr.bf16.mxu0 0
        %623 = vmatpush1.bf16.msra.mxu0 0
        %624 = vmatprep.subr.bf16.mxu0 0
        %625 = vmatpush1.bf16.msra.mxu0 0
        %626 = vmatprep.mubr.bf16.mxu0 0
        %627 = vmatmul.mubr.bf16.gmra.mrb[0].mxu0 %v593
        %v628 = vpop.f32.mrb[0].mxu0
        %v629 = vadd.f32 0.0, %v628
        %v630 = vpop.f32.mrb[0].mxu0
        %v631 = vpop.f32.mrb[0].mxu0
        %v632 = vpop.f32.mrb[0].mxu0
        %633 = vdwg.mxu0
        %v634 = vmul.f32 %v629, 0.025
        %v635 = vsub.f32 %v590, %v634
        %v636 = vmul.f32 %v592, %v629
        %637 = vadd.xlane.f32.xlu0 %v636
        %v638 = vpop.xlane.xlu0 %637
        %v639 = vmul.f32 %v638, 0.5
        %v640 = vmul.f32 %v635, %v635
        %641 = vadd.xlane.f32.xlu0 %v640
        %v642 = vpop.xlane.xlu0 %641
        %v643 = vmul.f32 %v642, 0.5
        %v644 = vadd.f32 %v347, %v356
        %v645 = vadd.f32 %v639, %v643
        %v646 = vsub.f32 %v644, %v645
        %vm647 = vcmp.lt.f32.partialorder %v352, %v646
        %v648 = vsel %vm647, 1, 0
        %649 = vset.pattern.permute.xlu0 0
        %650 = vperm.xlu0 %649, %v648
        %v651 = vpop.permute.xlu0 %650
        %vm652 = vcmp.eq.s32.totalorder %v651, 1
        %v653 = vsel %vm652, %v592, %v345
        %v654 = vsel %vm652, %v629, %v346
        %v655 = vsel %vm647, %v639, %v347
      $region45: #{_lambda_.1} parent=35 // loop_footer
        %s342 = sadd.s32 %s340, 1
      $region46: #{_lambda_.1} parent=35 // loop_footer_branch
        %339 = sbr.rel target = $region42
      $region47: #{_lambda_.1} parent=35 // loop_exit
        _
      %656 = vst [vmem:[#allocation2] sm:$0xff] %v345
      %657 = vst [vmem:[#allocation3] sm:$0xff] %v346
      %vm658 = vcmask 7168
      %659 = vst.msk [vmem:[#allocation4] sm:$0xff] %vm658, %v347
      %660 = vst [vmem:[%s215] sm:$0xff] %v345
      %p661 = scmp.lt.s32.totalorder %s15, 2
      %s662 = scalar_select %p661, %s15, 2
      %s663 = smul.addr %s662, 8
      %s664 = scalar_lea.vmem %s4, %s663
      // Predicated region
      $region48: #{_lambda_.1} parent=35 // pred_check
        %p665 = pneg %p127
      $region49: #{_lambda_.1} parent=35 // pred_check_branch
        %667 = sbr.rel (%p665) target = $region51
      $region50: #{_lambda_.1} parent=35 // pred_region
        _
      $region51: #{_lambda_.1} parent=35 // pred_fallthru
        _
    $region36: #{_lambda_.1} parent=5 // pred_fallthru
      _
    %p668 = scmp.le.s32.totalorder 2, %s10
    // Predicated region
    $region52: #{_lambda_.1} parent=5 // pred_check
      %p669 = pneg %p668
    $region53: #{_lambda_.1} parent=5 // pred_check_branch
      %671 = sbr.rel (%p669) target = $region55
    $region54: #{_lambda_.1} parent=5 // pred_region
      %s672 = ssub.s32 %s10, 2
      // Predicated region
      $region56: #{_lambda_.1} parent=54 // pred_check
        %p673 = pneg %p133
      $region57: #{_lambda_.1} parent=54 // pred_check_branch
        %675 = sbr.rel (%p673) target = $region59
      $region58: #{_lambda_.1} parent=54 // pred_region
        %p676 = scmp.lt.s32.totalorder %s16, 2
        %s677 = scalar_select %p676, %s16, 2
        %s678 = smul.addr %s677, 8
        %s679 = scalar_lea.vmem %s4, %s678
      $region59: #{_lambda_.1} parent=54 // pred_fallthru
        _
    $region55: #{_lambda_.1} parent=5 // pred_fallthru
      _
  $region6: #{_lambda_.1} parent=0 // loop_footer
    %s14 = sadd.s32 1, %s10
  $region7: #{_lambda_.1} parent=0 // loop_footer_branch
    %9 = sbr.rel target = $region3
  $region8: #{_lambda_.1} parent=0 // loop_exit
    _

</llo_original>
